<compile_context>
chip_gen: v7x
topology: tpu7x:2x2x1
jax: 0.10.0
libtpu: 0.0.40
codegen_flags: <defaults>
</compile_context>

<pallas_src>
import functools
import math

import jax
import jax.numpy as jnp
from jax.experimental import pallas as pl
from jax.experimental.pallas import tpu as pltpu


_LANE = 128
_ROW_ALIGN = 32                         # safe block-row multiple for f32/bf16/int8
_MIN_STEP_OUT_BYTES = 1 << 20           # target >= ~1 MiB of output HBM per grid step
_MIN_GRID_STEPS = 8                     # >= 4 steps per TensorCore on dual-TC (v7x)
_VMEM_TILE_BUDGET = 16 * 1024 * 1024    # total for double-buffered in+out tiles
_VMEM_LIMIT_BYTES = 32 * 1024 * 1024    # explicit scoped-VMEM limit (<= v7x 64 MiB)


def _round_up(x: int, n: int) -> int:
    return ((x + n - 1) // n) * n


def _gaussian_rbf_kernel(d_ref, cs_ref, iw_ref, o_ref):
    # d_ref : (TM, 1)  distances on the sublane axis.  The last grid block may
    #                  be ragged: out-of-range rows hold garbage, but their
    #                  stores are masked by Pallas (benign).
    # cs_ref: (1, K)   centers * inv_w           (precomputed in wrapper)
    # iw_ref: (1, K)   1 / (widths * sqrt(2))    (precomputed in wrapper)
    # o_ref : (TM, K)  output tile; full minor dim -> contiguous HBM writes.
    d = d_ref[...].astype(jnp.float32)             # math always in f32
    z = d * iw_ref[...] - cs_ref[...]              # broadcast -> (TM, K)
    o_ref[...] = jnp.exp(-(z * z)).astype(o_ref.dtype)


@functools.partial(jax.jit, static_argnames=("tile_m", "out_dtype"))
def gaussian_rbf(d, centers, widths, *, tile_m: int = 8192, out_dtype=None):
    """Pallas implementation of GaussianRBF.forward.

    out_dtype: output dtype.  Defaults to d.dtype (module semantics).  Pass
    jnp.bfloat16 whenever the consumer allows -- the kernel is output-
    writeback bound, so halving output bytes is ~2x wall clock.  Arithmetic
    is always f32; the cast happens only at the final store.
    """
    orig_shape = d.shape
    n_basis = centers.shape[-1]
    out_dtype = jnp.dtype(d.dtype if out_dtype is None else out_dtype)

    # Hoist the reciprocal and the 0.5 factor out of the per-element math:
    #   -0.5*((d - c)/w)^2 == -((d*iw - c*iw)^2),   iw = 1/(w*sqrt(2))
    inv_w = 1.0 / (widths.astype(jnp.float32) * math.sqrt(2.0))
    c_scaled = centers.astype(jnp.float32) * inv_w
    iw2 = inv_w.reshape(1, n_basis)
    cs2 = c_scaled.reshape(1, n_basis)

    # Distances as a column: no padding, no post-slice.  Pallas masks the
    # ragged last block of the grid.
    d_col = d.reshape(-1, 1)
    m = d_col.shape[0]

    # ---- static (trace-time) tile selection --------------------------------
    out_row_hbm = n_basis * out_dtype.itemsize                  # HBM bytes/row
    out_row_vmem = _round_up(n_basis, _LANE) * out_dtype.itemsize
    d_row_vmem = _LANE * 4        # (tm, 1) block allocates all 128 lanes / row
    # Largest tm whose double-buffered input + output tiles fit the budget.
    rows_vmem_cap = _VMEM_TILE_BUDGET // (2 * (out_row_vmem + d_row_vmem))
    rows_vmem_cap = max(_ROW_ALIGN, rows_vmem_cap // _ROW_ALIGN * _ROW_ALIGN)
    # Enough rows per step to amortize the ~0.35 us/step pipeline overhead.
    rows_min_bytes = _round_up(pl.cdiv(_MIN_STEP_OUT_BYTES, out_row_hbm), _ROW_ALIGN)
    # Enough grid steps (when m allows) so each v7x core keeps double-buffering.
    rows_min_steps = _round_up(pl.cdiv(m, _MIN_GRID_STEPS), _ROW_ALIGN)
    tm = min(tile_m, rows_vmem_cap, max(rows_min_bytes, rows_min_steps))
    tm = max(_ROW_ALIGN, min(tm, _round_up(m, _ROW_ALIGN)))
    grid = (pl.cdiv(m, tm),)

    out = pl.pallas_call(
        _gaussian_rbf_kernel,
        out_shape=jax.ShapeDtypeStruct((m, n_basis), out_dtype),
        grid_spec=pltpu.PrefetchScalarGridSpec(
            num_scalar_prefetch=0,
            grid=grid,
            in_specs=[
                pl.BlockSpec((tm, 1), lambda i: (i, 0)),
                pl.BlockSpec((1, n_basis), lambda i: (0, 0)),
                pl.BlockSpec((1, n_basis), lambda i: (0, 0)),
            ],
            out_specs=pl.BlockSpec((tm, n_basis), lambda i: (i, 0)),
        ),
        compiler_params=pltpu.CompilerParams(
            dimension_semantics=("parallel",),
            vmem_limit_bytes=_VMEM_LIMIT_BYTES,
        ),
    )(d_col, cs2, iw2)

    return out.reshape(orig_shape + (n_basis,))


if __name__ == "__main__":
    dtype = jnp.float32

    def reference(d, centers, widths):
        return jnp.exp(-0.5 * ((d[..., None] - centers) / widths) ** 2)

    # --- case 1: small "molecule" batch, modest basis count -----------------
    n1 = 32
    c1 = jnp.linspace(0.0, 8.0, n1, dtype=dtype)
    w1 = jnp.ones_like(c1)
    d1 = jax.random.uniform(jax.random.PRNGKey(0), (2, 4, 16), dtype=dtype,
                            minval=0.0, maxval=8.0)
    r1 = jax.block_until_ready(gaussian_rbf(d1, c1, w1))
    assert r1.shape == d1.shape + (n1,)
    assert jnp.allclose(r1, reference(d1, c1, w1), atol=2e-5, rtol=1e-5)

    # --- case 2: basis count not a multiple of 128, ragged row count --------
    n2 = 20
    c2 = jnp.linspace(0.0, 5.0, n2, dtype=dtype)
    w2 = jnp.full_like(c2, 0.5)
    d2 = jax.random.uniform(jax.random.PRNGKey(1), (3, 100), dtype=dtype,
                            minval=0.0, maxval=5.0)
    r2 = jax.block_until_ready(gaussian_rbf(d2, c2, w2))
    assert r2.shape == d2.shape + (n2,)
    assert jnp.allclose(r2, reference(d2, c2, w2), atol=2e-5, rtol=1e-5)

    # --- case 3: bf16 output (recommended whenever the consumer allows) -----
    n3 = 128
    c3 = jnp.linspace(0.0, 8.0, n3, dtype=dtype)
    w3 = jnp.ones_like(c3)
    d3 = jax.random.uniform(jax.random.PRNGKey(2), (4, 64), dtype=dtype,
                            minval=0.0, maxval=8.0)
    r3 = jax.block_until_ready(gaussian_rbf(d3, c3, w3, out_dtype=jnp.bfloat16))
    assert r3.dtype == jnp.bfloat16
    assert r3.shape == d3.shape + (n3,)
    assert jnp.allclose(r3.astype(jnp.float32), reference(d3, c3, w3),
                        atol=1e-2, rtol=1e-2)

    print("KERNEL_OK")
</pallas_src>

<mosaic_0001>
module attributes {stable_mosaic.version = 11 : i64} {
  func.func @_gaussian_rbf_kernel(%arg0: i32, %arg1: memref<128x1xf32, #tpu.memory_space<vmem>>, %arg2: memref<1x32xf32, #tpu.memory_space<vmem>>, %arg3: memref<1x32xf32, #tpu.memory_space<vmem>>, %arg4: memref<128x32xf32, #tpu.memory_space<vmem>>) attributes {dimension_semantics = [#tpu.dimension_semantics<parallel>], iteration_bounds = array<i64: 1>, scalar_prefetch = 0 : i64, scratch_operands = 0 : i64, tpu.core_type = #tpu.core_type<tc>, window_params = [{transform_indices = @transform_0, window_bounds = array<i64: 128, 1>}, {pipeline_mode = #tpu.pipeline_mode<synchronous>, transform_indices = @transform_1, window_bounds = array<i64: 1, 32>}, {pipeline_mode = #tpu.pipeline_mode<synchronous>, transform_indices = @transform_2, window_bounds = array<i64: 1, 32>}, {transform_indices = @transform_3, window_bounds = array<i64: 128, 32>}]} {
    %c0 = arith.constant 0 : index
    %c0_0 = arith.constant 0 : index
    %0 = vector.load %arg1[%c0, %c0_0] : memref<128x1xf32, #tpu.memory_space<vmem>>, vector<128x1xf32>
    %c0_1 = arith.constant 0 : index
    %c0_2 = arith.constant 0 : index
    %1 = vector.load %arg3[%c0_1, %c0_2] : memref<1x32xf32, #tpu.memory_space<vmem>>, vector<1x32xf32>
    %2 = vector.broadcast %0 : vector<128x1xf32> to vector<128x32xf32>
    %3 = vector.broadcast %1 : vector<1x32xf32> to vector<128x32xf32>
    %4 = arith.mulf %2, %3 : vector<128x32xf32>
    %c0_3 = arith.constant 0 : index
    %c0_4 = arith.constant 0 : index
    %5 = vector.load %arg2[%c0_3, %c0_4] : memref<1x32xf32, #tpu.memory_space<vmem>>, vector<1x32xf32>
    %6 = vector.broadcast %5 : vector<1x32xf32> to vector<128x32xf32>
    %7 = arith.subf %4, %6 : vector<128x32xf32>
    %8 = arith.mulf %7, %7 : vector<128x32xf32>
    %cst = arith.constant 0.000000e+00 : f32
    %9 = vector.broadcast %cst : f32 to vector<128x32xf32>
    %10 = arith.subf %9, %8 : vector<128x32xf32>
    %11 = math.exp %10 : vector<128x32xf32>
    %c0_5 = arith.constant 0 : index
    %c0_6 = arith.constant 0 : index
    %12 = vector.load %arg4[%c0_5, %c0_6] : memref<128x32xf32, #tpu.memory_space<vmem>>, vector<128x32xf32>
    tpu.vector_store %arg4[%c0_5, %c0_6], %11 {strides = array<i32>} : memref<128x32xf32, #tpu.memory_space<vmem>>, vector<128x32xf32>,
    return
  }
  func.func @transform_0(%arg0: i32) -> (i32, i32) {
    %c0_i32 = arith.constant 0 : i32
    %c0_i32_0 = arith.constant 0 : i32
    return %arg0, %c0_i32 : i32, i32
  }
  func.func @transform_1(%arg0: i32) -> (i32, i32) {
    %c0_i32 = arith.constant 0 : i32
    %c0_i32_0 = arith.constant 0 : i32
    %c0_i32_1 = arith.constant 0 : i32
    return %c0_i32, %c0_i32_0 : i32, i32
  }
  func.func @transform_2(%arg0: i32) -> (i32, i32) {
    %c0_i32 = arith.constant 0 : i32
    %c0_i32_0 = arith.constant 0 : i32
    %c0_i32_1 = arith.constant 0 : i32
    return %c0_i32, %c0_i32_0 : i32, i32
  }
  func.func @transform_3(%arg0: i32) -> (i32, i32) {
    %c0_i32 = arith.constant 0 : i32
    %c0_i32_0 = arith.constant 0 : i32
    return %arg0, %c0_i32 : i32, i32
  }
}

</mosaic_0001>

<llo_original>
// kernel: gaussian_rbf.1
$region0: #{gaussian_rbf.1}
  #allocation0 [shape = 'u32[]', space=smem, size = 0x4, offset = 0x4, fixed_abs, tag = 'smem constant byte address 0x4 - core index']
  #allocation1 [shape = 'u32[144,128]{1,0:T(1,128)}', space=vmem, size = 0x12000, scoped, tag = 'internal scratch']
  %s0 = inlined_call_operand.vmem [shape: f32[128,1], index: 0, kind: input, shape index: {}]
  %s1 = inlined_call_operand.vmem [shape: f32[1,32], index: 1, kind: input, shape index: {}]
  %s2 = inlined_call_operand.vmem [shape: f32[1,32], index: 2, kind: input, shape index: {}]
  %s3 = inlined_call_operand.hbm [shape: f32[128,32], index: 3, kind: output, shape index: {}]
  %s4 = sld [smem:[#allocation0]]
  $region22: #{gaussian_rbf.1} parent=0
    _
  %s6 = ssub.s32 1, %s4
  %s7 = scalar_select 0, %s6, %s4
  $region1: #{gaussian_rbf.1} parent=0
    #allocation2 [shape = 'u8[65536]{0}', space=vmem, size = 0x10000, scoped, tag = 'output window, operand 0, single buffered']
    #allocation3 [shape = 's32[1]{0}', space=sflag, size = 0x4, scoped, tag = 'scoped memory for gaussian_rbf.1']
    %8 = vsyncpa [#allocation3], 0
    // Predicated region
    $region2: #{gaussian_rbf.1} parent=1 // pred_check
      _
    $region3: #{gaussian_rbf.1} parent=1 // pred_check_branch
      %10 = sbr.rel (0) target = $region5
    $region4: #{gaussian_rbf.1} parent=1 // pred_region
      _
    $region5: #{gaussian_rbf.1} parent=1 // pred_fallthru
      _
    // Predicated region
    $region6: #{gaussian_rbf.1} parent=1 // pred_check
      _
    $region7: #{gaussian_rbf.1} parent=1 // pred_check_branch
      %12 = sbr.rel (0) target = $region9
    $region8: #{gaussian_rbf.1} parent=1 // pred_region
      _
    $region9: #{gaussian_rbf.1} parent=1 // pred_fallthru
      _
    // Predicated region
    $region10: #{gaussian_rbf.1} parent=1 // pred_check
      _
    $region11: #{gaussian_rbf.1} parent=1 // pred_check_branch
      %14 = sbr.rel (0) target = $region13
    $region12: #{gaussian_rbf.1} parent=1 // pred_region
      _
    $region13: #{gaussian_rbf.1} parent=1 // pred_fallthru
      _
    %v15 = vld [vmem:[%s0] sm:$0xff]
    %v16 = vld [vmem:[%s0 + $0x8] sm:$0xff]
    %v17 = vld [vmem:[%s0 + $0x10] sm:$0xff]
    %v18 = vld [vmem:[%s0 + $0x18] sm:$0xff]
    %v19 = vld [vmem:[%s0 + $0x20] sm:$0xff]
    %v20 = vld [vmem:[%s0 + $0x28] sm:$0xff]
    %v21 = vld [vmem:[%s0 + $0x30] sm:$0xff]
    %v22 = vld [vmem:[%s0 + $0x38] sm:$0xff]
    %v23 = vld [vmem:[%s0 + $0x40] sm:$0xff]
    %v24 = vld [vmem:[%s0 + $0x48] sm:$0xff]
    %v25 = vld [vmem:[%s0 + $0x50] sm:$0xff]
    %v26 = vld [vmem:[%s0 + $0x58] sm:$0xff]
    %v27 = vld [vmem:[%s0 + $0x60] sm:$0xff]
    %v28 = vld [vmem:[%s0 + $0x68] sm:$0xff]
    %v29 = vld [vmem:[%s0 + $0x70] sm:$0xff]
    %v30 = vld [vmem:[%s0 + $0x78] sm:$0xff]
    %v31 = vld [vmem:[%s2] sm:$0x1]
    %33 = vset.pattern.permute.xlu0 0
    %34 = vperm.xlu0 %33, %v15
    %v35 = vpop.permute.xlu0 %34
    %38 = vset.pattern.permute.xlu0 0
    %39 = vperm.xlu0 %38, %v16
    %v40 = vpop.permute.xlu0 %39
    %43 = vset.pattern.permute.xlu0 0
    %44 = vperm.xlu0 %43, %v17
    %v45 = vpop.permute.xlu0 %44
    %48 = vset.pattern.permute.xlu0 0
    %49 = vperm.xlu0 %48, %v18
    %v50 = vpop.permute.xlu0 %49
    %53 = vset.pattern.permute.xlu0 0
    %54 = vperm.xlu0 %53, %v19
    %v55 = vpop.permute.xlu0 %54
    %58 = vset.pattern.permute.xlu0 0
    %59 = vperm.xlu0 %58, %v20
    %v60 = vpop.permute.xlu0 %59
    %63 = vset.pattern.permute.xlu0 0
    %64 = vperm.xlu0 %63, %v21
    %v65 = vpop.permute.xlu0 %64
    %68 = vset.pattern.permute.xlu0 0
    %69 = vperm.xlu0 %68, %v22
    %v70 = vpop.permute.xlu0 %69
    %73 = vset.pattern.permute.xlu0 0
    %74 = vperm.xlu0 %73, %v23
    %v75 = vpop.permute.xlu0 %74
    %78 = vset.pattern.permute.xlu0 0
    %79 = vperm.xlu0 %78, %v24
    %v80 = vpop.permute.xlu0 %79
    %83 = vset.pattern.permute.xlu0 0
    %84 = vperm.xlu0 %83, %v25
    %v85 = vpop.permute.xlu0 %84
    %88 = vset.pattern.permute.xlu0 0
    %89 = vperm.xlu0 %88, %v26
    %v90 = vpop.permute.xlu0 %89
    %93 = vset.pattern.permute.xlu0 0
    %94 = vperm.xlu0 %93, %v27
    %v95 = vpop.permute.xlu0 %94
    %98 = vset.pattern.permute.xlu0 0
    %99 = vperm.xlu0 %98, %v28
    %v100 = vpop.permute.xlu0 %99
    %103 = vset.pattern.permute.xlu0 0
    %104 = vperm.xlu0 %103, %v29
    %v105 = vpop.permute.xlu0 %104
    %108 = vset.pattern.permute.xlu0 0
    %109 = vperm.xlu0 %108, %v30
    %v110 = vpop.permute.xlu0 %109
    %v113 = vlaneseq
    %v114 = vshrl.u32 %v113, 7
    %v115 = vsub.s32 0, %v114
    %v116 = vrot.slane %v31, %v115
    %v118 = vmul.f32 %v35, %v116
    %v119 = vmul.f32 %v40, %v116
    %v120 = vmul.f32 %v45, %v116
    %v121 = vmul.f32 %v50, %v116
    %v122 = vmul.f32 %v55, %v116
    %v123 = vmul.f32 %v60, %v116
    %v124 = vmul.f32 %v65, %v116
    %v125 = vmul.f32 %v70, %v116
    %v126 = vmul.f32 %v75, %v116
    %v127 = vmul.f32 %v80, %v116
    %v128 = vmul.f32 %v85, %v116
    %v129 = vmul.f32 %v90, %v116
    %v130 = vmul.f32 %v95, %v116
    %v131 = vmul.f32 %v100, %v116
    %v132 = vmul.f32 %v105, %v116
    %v133 = vmul.f32 %v110, %v116
    %v134 = vld [vmem:[%s1] sm:$0x1]
    %v136 = vlaneseq
    %v137 = vshrl.u32 %v136, 7
    %v138 = vsub.s32 0, %v137
    %v139 = vrot.slane %v134, %v138
    %v141 = vsub.f32 %v118, %v139
    %v142 = vsub.f32 %v119, %v139
    %v143 = vsub.f32 %v120, %v139
    %v144 = vsub.f32 %v121, %v139
    %v145 = vsub.f32 %v122, %v139
    %v146 = vsub.f32 %v123, %v139
    %v147 = vsub.f32 %v124, %v139
    %v148 = vsub.f32 %v125, %v139
    %v149 = vsub.f32 %v126, %v139
    %v150 = vsub.f32 %v127, %v139
    %v151 = vsub.f32 %v128, %v139
    %v152 = vsub.f32 %v129, %v139
    %v153 = vsub.f32 %v130, %v139
    %v154 = vsub.f32 %v131, %v139
    %v155 = vsub.f32 %v132, %v139
    %v156 = vsub.f32 %v133, %v139
    %v157 = vmul.f32 %v141, %v141
    %v158 = vmul.f32 %v142, %v142
    %v159 = vmul.f32 %v143, %v143
    %v160 = vmul.f32 %v144, %v144
    %v161 = vmul.f32 %v145, %v145
    %v162 = vmul.f32 %v146, %v146
    %v163 = vmul.f32 %v147, %v147
    %v164 = vmul.f32 %v148, %v148
    %v165 = vmul.f32 %v149, %v149
    %v166 = vmul.f32 %v150, %v150
    %v167 = vmul.f32 %v151, %v151
    %v168 = vmul.f32 %v152, %v152
    %v169 = vmul.f32 %v153, %v153
    %v170 = vmul.f32 %v154, %v154
    %v171 = vmul.f32 %v155, %v155
    %v172 = vmul.f32 %v156, %v156
    %v173 = vsub.f32 0.0, %v157
    %v174 = vsub.f32 0.0, %v158
    %v175 = vsub.f32 0.0, %v159
    %v176 = vsub.f32 0.0, %v160
    %v177 = vsub.f32 0.0, %v161
    %v178 = vsub.f32 0.0, %v162
    %v179 = vsub.f32 0.0, %v163
    %v180 = vsub.f32 0.0, %v164
    %v181 = vsub.f32 0.0, %v165
    %v182 = vsub.f32 0.0, %v166
    %v183 = vsub.f32 0.0, %v167
    %v184 = vsub.f32 0.0, %v168
    %v185 = vsub.f32 0.0, %v169
    %v186 = vsub.f32 0.0, %v170
    %v187 = vsub.f32 0.0, %v171
    %v188 = vsub.f32 0.0, %v172
    %v189 = vmul.f32 %v173, 1.442695
    %v190 = vpow.pop %v189
    %v191 = vmul.f32 %v174, 1.442695
    %v192 = vpow.pop %v191
    %v193 = vmul.f32 %v175, 1.442695
    %v194 = vpow.pop %v193
    %v195 = vmul.f32 %v176, 1.442695
    %v196 = vpow.pop %v195
    %v197 = vmul.f32 %v177, 1.442695
    %v198 = vpow.pop %v197
    %v199 = vmul.f32 %v178, 1.442695
    %v200 = vpow.pop %v199
    %v201 = vmul.f32 %v179, 1.442695
    %v202 = vpow.pop %v201
    %v203 = vmul.f32 %v180, 1.442695
    %v204 = vpow.pop %v203
    %v205 = vmul.f32 %v181, 1.442695
    %v206 = vpow.pop %v205
    %v207 = vmul.f32 %v182, 1.442695
    %v208 = vpow.pop %v207
    %v209 = vmul.f32 %v183, 1.442695
    %v210 = vpow.pop %v209
    %v211 = vmul.f32 %v184, 1.442695
    %v212 = vpow.pop %v211
    %v213 = vmul.f32 %v185, 1.442695
    %v214 = vpow.pop %v213
    %v215 = vmul.f32 %v186, 1.442695
    %v216 = vpow.pop %v215
    %v217 = vmul.f32 %v187, 1.442695
    %v218 = vpow.pop %v217
    %v219 = vmul.f32 %v188, 1.442695
    %v220 = vpow.pop %v219
    %vm221 = vcmask 261120
    %222 = vst.msk [vmem:[#allocation2] sm:$0xff] %vm221, %v190
    %223 = vst.msk [vmem:[#allocation2 + $0x8] sm:$0xff] %vm221, %v192
    %224 = vst.msk [vmem:[#allocation2 + $0x10] sm:$0xff] %vm221, %v194
    %225 = vst.msk [vmem:[#allocation2 + $0x18] sm:$0xff] %vm221, %v196
    %226 = vst.msk [vmem:[#allocation2 + $0x20] sm:$0xff] %vm221, %v198
    %227 = vst.msk [vmem:[#allocation2 + $0x28] sm:$0xff] %vm221, %v200
    %228 = vst.msk [vmem:[#allocation2 + $0x30] sm:$0xff] %vm221, %v202
    %229 = vst.msk [vmem:[#allocation2 + $0x38] sm:$0xff] %vm221, %v204
    %230 = vst.msk [vmem:[#allocation2 + $0x40] sm:$0xff] %vm221, %v206
    %231 = vst.msk [vmem:[#allocation2 + $0x48] sm:$0xff] %vm221, %v208
    %232 = vst.msk [vmem:[#allocation2 + $0x50] sm:$0xff] %vm221, %v210
    %233 = vst.msk [vmem:[#allocation2 + $0x58] sm:$0xff] %vm221, %v212
    %234 = vst.msk [vmem:[#allocation2 + $0x60] sm:$0xff] %vm221, %v214
    %235 = vst.msk [vmem:[#allocation2 + $0x68] sm:$0xff] %vm221, %v216
    %236 = vst.msk [vmem:[#allocation2 + $0x70] sm:$0xff] %vm221, %v218
    %237 = vst.msk [vmem:[#allocation2 + $0x78] sm:$0xff] %vm221, %v220
    // Predicated region
    $region14: #{gaussian_rbf.1} parent=1 // pred_check
      _
    $region15: #{gaussian_rbf.1} parent=1 // pred_check_branch
      %239 = sbr.rel (0) target = $region17
    $region16: #{gaussian_rbf.1} parent=1 // pred_region
      %s241 = ssub.s32 2048, 2048
      %242 = vsyncadd [#allocation3], %s241
      %s243 = sshll.u32 [#allocation2], 4
      %s244 = int_to_ptr.vmem [resolvable:$true] %s243
      %249 = dma.vmem_to_hbm [thread:$0]  %s244, 2048, %s3, [#allocation3], 128, 128, 8
    $region17: #{gaussian_rbf.1} parent=1 // pred_fallthru
      _
    // Predicated region
    $region18: #{gaussian_rbf.1} parent=1 // pred_check
      _
    $region19: #{gaussian_rbf.1} parent=1 // pred_check_branch
      %251 = sbr.rel (0) target = $region21
    $region20: #{gaussian_rbf.1} parent=1 // pred_region
      %252 = dma.done [#allocation3], 2048
    $region21: #{gaussian_rbf.1} parent=1 // pred_fallthru
      _
    %253 = vsyncpa [#allocation3], 1

</llo_original>
